<compile_context>
chip_gen: v6e
topology: v6e:2x2x1
jax: 0.10.0
libtpu: 0.0.40
codegen_flags: <defaults>
</compile_context>

<pallas_src>
import functools

import jax
import jax.numpy as jnp
from jax.experimental import pallas as pl
from jax.experimental.pallas import tpu as pltpu


def _round_up(n, m):
    return ((n + m - 1) // m) * m


def _cdiv(a, b):
    return (a + b - 1) // b


# ---------------------------------------------------------------------------
# Hardware queries (best effort, always with a safe fallback).
# ---------------------------------------------------------------------------
def _vmem_capacity_bytes():
    try:
        return int(pltpu.get_tpu_info().vmem_capacity_bytes)
    except Exception:
        return 64 << 20  # conservative: v7x per-TensorCore VMEM


def _lane_pad_multiple():
    # v6e / v7x have a 256x256 MXU: pad contraction/output dims to 256 there;
    # 128 is correct (and fully feeds the MXU) on v5e and older.
    try:
        kind = jax.devices()[0].device_kind.lower()
    except Exception:
        return 128
    if ("v6" in kind) or ("v7" in kind) or ("trillium" in kind):
        return 256
    return 128


# ---------------------------------------------------------------------------
# One-time parameter preparation (pad + bf16 cast).  Do NOT call per forward.
# ---------------------------------------------------------------------------
def prepare_mlp_params(w1, b1, w2, b2, *, lane_pad=None):
    """w1:(In,H), b1:(H,), w2:(H,Out), b2:(Out,) -> padded bf16/f32 params.

    Only pads H / Out when they are not already MXU-aligned.  The input dim
    In is deliberately left unpadded so x never needs a per-call padded copy.
    """
    # TODO(synk): for weight-bandwidth-bound deployments, quantize weights here
    # (int8/int4 on v5e/v6e, fp8 on v7x) instead of bf16.
    if lane_pad is None:
        lane_pad = _lane_pad_multiple()
    In, H = w1.shape
    Out = w2.shape[1]
    p_h = _round_up(H, lane_pad)
    p_out = _round_up(Out, lane_pad)

    w1_p = w1.astype(jnp.bfloat16)
    w2_p = w2.astype(jnp.bfloat16)
    if p_h != H:
        w1_p = jnp.pad(w1_p, ((0, 0), (0, p_h - H)))
        w2_p = jnp.pad(w2_p, ((0, p_h - H), (0, 0)))
    if p_out != Out:
        w2_p = jnp.pad(w2_p, ((0, 0), (0, p_out - Out)))
    b1_p = jnp.pad(b1.astype(jnp.float32), (0, p_h - H)).reshape(1, p_h)
    b2_p = jnp.pad(b2.astype(jnp.float32), (0, p_out - Out)).reshape(1, p_out)
    return (w1_p, b1_p, w2_p, b2_p, Out)


# ---------------------------------------------------------------------------
# Fused single-pass kernel (weights resident in VMEM).
# ---------------------------------------------------------------------------
def _mlp_fused_kernel(x_ref, w1_ref, b1_ref, w2_ref, b2_ref, o_ref):
    # fc1: cast the f32 x tile to bf16 in-kernel (avoids a per-call HBM copy),
    # MXU matmul with f32 accumulation, bias + ReLU in f32.
    x_bf16 = x_ref[...].astype(jnp.bfloat16)
    h = jnp.dot(x_bf16, w1_ref[...], preferred_element_type=jnp.float32)
    h = jnp.maximum(h + b1_ref[...], 0.0)
    # fc2: single downcast of the activation, f32 accumulation, bias in f32.
    out = jnp.dot(h.astype(jnp.bfloat16), w2_ref[...],
                  preferred_element_type=jnp.float32)
    # TODO(synk): allow a bf16 output dtype for v5e's single-vst store path
    # when the consumer tolerates it; kept f32 to match nn.Linear semantics.
    o_ref[...] = (out + b2_ref[...]).astype(o_ref.dtype)


def _fused_vmem_need(tm, In, p_h, p_out):
    # Single-buffered resident weights/biases.
    resident = In * p_h * 2 + p_h * p_out * 2 + (p_h + p_out) * 4
    # Double-buffered x (f32) and out (f32) tiles.
    tiles = 2 * tm * In * 4 + 2 * tm * p_out * 4
    # In-kernel temporaries: bf16 x copy, f32 h + bf16 h (both live across the
    # second dot), f32 out before the store.
    temps = tm * In * 2 + tm * p_h * (4 + 2) + tm * p_out * 4
    return resident + tiles + temps + (2 << 20)  # + compiler-internal scratch


def _pick_tm(B, tm_max):
    """Batch tile: multiple of 16, sized so large batches split into an even
    number (>=2) of tiles (both v7x TensorCores busy) with minimal last-tile
    waste.  Tiny batches use a single full-extent tile."""
    if B <= 16:
        return B
    tm_max = max(32, _round_up(tm_max, 16))
    n = _cdiv(B, tm_max)
    if n < 2:
        n = 2
    elif n % 2:
        n += 1
    return _round_up(_cdiv(B, n), 16)


def _fused_forward(x, w1_p, b1_p, w2_p, b2_p, *, tm, vmem_budget):
    B, In = x.shape
    p_h = w1_p.shape[1]
    p_out = w2_p.shape[1]
    grid = (_cdiv(B, tm),)

    flops = 2 * B * (In * p_h + p_h * p_out)
    bytes_accessed = (x.size * 4 + w1_p.size * 2 + w2_p.size * 2
                      + b1_p.size * 4 + b2_p.size * 4 + B * p_out * 4)

    vmem_need = _fused_vmem_need(tm, In, p_h, p_out)
    vmem_limit = None
    if vmem_need > (32 << 20):
        # Never request more than ~85% of the chip's physical VMEM
        # (v7x: 64 MiB per TensorCore vs 128 MiB on v5e/v6e).
        vmem_limit = min(_round_up(vmem_need * 5 // 4, 1 << 20), vmem_budget)

    def call(single_buffer_weights):
        def resident(shape):
            if single_buffer_weights:
                return pl.BlockSpec(shape, lambda i: (0, 0),
                                    pipeline_mode=pl.Buffered(1))
            return pl.BlockSpec(shape, lambda i: (0, 0))

        return pl.pallas_call(
            _mlp_fused_kernel,
            out_shape=jax.ShapeDtypeStruct((B, p_out), jnp.float32),
            grid=grid,
            in_specs=[
                pl.BlockSpec((tm, In), lambda i: (i, 0)),  # x tile (pipelined)
                resident(w1_p.shape),                      # W1 resident
                resident(b1_p.shape),                      # b1 resident
                resident(w2_p.shape),                      # W2 resident
                resident(b2_p.shape),                      # b2 resident
            ],
            out_specs=pl.BlockSpec((tm, p_out), lambda i: (i, 0)),
            compiler_params=pltpu.CompilerParams(
                dimension_semantics=("parallel",),
                vmem_limit_bytes=vmem_limit,
            ),
            cost_estimate=pl.CostEstimate(
                flops=flops, transcendentals=0, bytes_accessed=bytes_accessed),
        )(x, w1_p, b1_p, w2_p, b2_p)

    single_buffer = hasattr(pl, "Buffered")
    try:
        return call(single_buffer)
    except Exception:
        if not single_buffer:
            raise
        return call(False)  # retry with default (double) buffering


# ---------------------------------------------------------------------------
# K-tiled fallback (weights too large to stay VMEM-resident, e.g. on v7x).
# ---------------------------------------------------------------------------
def _linear_kernel(x_ref, w_ref, b_ref, o_ref, acc_ref, *, relu):
    @pl.when(pl.program_id(2) == 0)
    def _():
        acc_ref[...] = jnp.zeros_like(acc_ref)

    acc_ref[...] += jnp.dot(x_ref[...].astype(jnp.bfloat16), w_ref[...],
                            preferred_element_type=jnp.float32)

    @pl.when(pl.program_id(2) == pl.num_programs(2) - 1)
    def _():
        out = acc_ref[...] + b_ref[...]
        if relu:
            out = jnp.maximum(out, 0.0)
        o_ref[...] = out.astype(o_ref.dtype)


def _pick_tile(dim, cap=512):
    """Largest multiple of 128 <= cap that exactly divides a 128-aligned dim
    (no overhang on reduction/output axes)."""
    start = min(cap, dim)
    for cand in range(start, 127, -128):
        if dim % cand == 0:
            return cand
    return dim


def _linear_tiled(x, w, b, *, relu, out_dtype, tm):
    B, K = x.shape
    N = w.shape[1]
    # K must tile without overhang (garbage would be accumulated); N is always
    # 128/256-aligned here (padded weights).
    tk = _pick_tile(K) if K % 128 == 0 else K
    tn = _pick_tile(N)
    grid = (_cdiv(B, tm), _cdiv(N, tn), _cdiv(K, tk))
    kernel = functools.partial(_linear_kernel, relu=relu)
    return pl.pallas_call(
        kernel,
        out_shape=jax.ShapeDtypeStruct((B, N), out_dtype),
        grid=grid,
        in_specs=[
            pl.BlockSpec((tm, tk), lambda i, j, k: (i, k)),
            pl.BlockSpec((tk, tn), lambda i, j, k: (k, j)),
            pl.BlockSpec((1, tn), lambda i, j, k: (0, j)),
        ],
        out_specs=pl.BlockSpec((tm, tn), lambda i, j, k: (i, j)),
        scratch_shapes=[pltpu.VMEM((tm, tn), jnp.float32)],
        compiler_params=pltpu.CompilerParams(
            dimension_semantics=("parallel", "parallel", "arbitrary")),
    )(x, w, b)


def _tiled_forward(x, w1_p, b1_p, w2_p, b2_p, *, tm=None):
    B = x.shape[0]
    if tm is None:
        tm = _pick_tm(B, 256)
    # Hidden activation stored as bf16: matches the fused path's single
    # downcast before fc2 and halves the intermediate HBM traffic.
    h = _linear_tiled(x, w1_p, b1_p, relu=True, out_dtype=jnp.bfloat16, tm=tm)
    return _linear_tiled(h, w2_p, b2_p, relu=False, out_dtype=jnp.float32,
                         tm=tm)


# ---------------------------------------------------------------------------
# Forward wrappers.
# ---------------------------------------------------------------------------
def mlp_forward_prepared(x, params, *, tm_max=None):
    """x: (B, In) f32; params from prepare_mlp_params().  Returns (B, Out) f32."""
    w1_p, b1_p, w2_p, b2_p, out_dim = params
    B, In = x.shape
    assert w1_p.shape[0] == In
    p_h = w1_p.shape[1]
    p_out = w2_p.shape[1]

    vmem_cap = _vmem_capacity_bytes()
    vmem_budget = int(vmem_cap * 0.85)
    if tm_max is None:
        # Bigger batch tiles on the 128 MiB v5e/v6e, smaller on v7x (64 MiB).
        tm_max = 1024 if vmem_cap >= (96 << 20) else 512

    tm = _pick_tm(B, tm_max)
    while tm > 64 and _fused_vmem_need(tm, In, p_h, p_out) > vmem_budget:
        tm = max(64, _round_up(tm // 2, 16))

    if _fused_vmem_need(tm, In, p_h, p_out) <= vmem_budget:
        out = _fused_forward(x, w1_p, b1_p, w2_p, b2_p, tm=tm,
                             vmem_budget=vmem_budget)
    else:
        # Weights + hidden activation cannot stay VMEM-resident (bites first
        # on v7x's 64 MiB): two K-tiled matmul passes with f32 accumulators.
        out = _tiled_forward(x, w1_p, b1_p, w2_p, b2_p)

    return out if out.shape[1] == out_dim else out[:, :out_dim]


def mlp_forward(x, w1, b1, w2, b2):
    """Convenience wrapper (prepares weights per call).  For repeated calls,
    run prepare_mlp_params() once and use mlp_forward_prepared()."""
    return mlp_forward_prepared(x, prepare_mlp_params(w1, b1, w2, b2))


if __name__ == "__main__":
    # Small shapes consistent with MLP(input_size, hidden_size, output_size).
    batch = 8
    input_size = 16
    hidden_size = 32
    output_size = 8

    key = jax.random.PRNGKey(0)
    kx, kw1, kb1, kw2, kb2 = jax.random.split(key, 5)

    bound1 = 1.0 / (input_size ** 0.5)
    bound2 = 1.0 / (hidden_size ** 0.5)
    x = jax.random.normal(kx, (batch, input_size), dtype=jnp.float32)
    w1 = jax.random.uniform(kw1, (input_size, hidden_size), jnp.float32,
                            -bound1, bound1)
    b1 = jax.random.uniform(kb1, (hidden_size,), jnp.float32, -bound1, bound1)
    w2 = jax.random.uniform(kw2, (hidden_size, output_size), jnp.float32,
                            -bound2, bound2)
    b2 = jax.random.uniform(kb2, (output_size,), jnp.float32, -bound2, bound2)

    # One-time weight prep (pad + bf16 cast); reused across forward calls.
    params = prepare_mlp_params(w1, b1, w2, b2)

    out = mlp_forward_prepared(x, params)
    jax.block_until_ready(out)
    assert out.shape == (batch, output_size)

    # Reference with the same bf16 operand casts / f32 accumulation.
    xb = x.astype(jnp.bfloat16).astype(jnp.float32)
    w1b = w1.astype(jnp.bfloat16).astype(jnp.float32)
    w2b = w2.astype(jnp.bfloat16).astype(jnp.float32)
    h_ref = jnp.maximum(xb @ w1b + b1, 0.0)
    ref = h_ref.astype(jnp.bfloat16).astype(jnp.float32) @ w2b + b2
    assert jnp.allclose(out, ref, atol=1e-3, rtol=1e-3)

    # Sanity vs. pure-f32 math (bf16 operand error only).
    ref_f32 = jnp.maximum(x @ w1 + b1, 0.0) @ w2 + b2
    assert jnp.allclose(out, ref_f32, atol=2e-2, rtol=2e-2)

    # Also exercise the K-tiled fallback path (used when weights don't fit VMEM).
    w1_p, b1_p, w2_p, b2_p, out_dim = params
    out_tiled = _tiled_forward(x, w1_p, b1_p, w2_p, b2_p)[:, :out_dim]
    jax.block_until_ready(out_tiled)
    assert jnp.allclose(out_tiled, ref, atol=1e-3, rtol=1e-3)

    print("KERNEL_OK")
</pallas_src>

<mosaic_0001>
module attributes {stable_mosaic.version = 11 : i64} {
  func.func @_mlp_fused_kernel(%arg0: i32, %arg1: memref<8x16xf32, #tpu.memory_space<vmem>>, %arg2: memref<16x128xbf16, #tpu.memory_space<vmem>>, %arg3: memref<1x128xf32, #tpu.memory_space<vmem>>, %arg4: memref<128x128xbf16, #tpu.memory_space<vmem>>, %arg5: memref<1x128xf32, #tpu.memory_space<vmem>>, %arg6: memref<8x128xf32, #tpu.memory_space<vmem>>) attributes {dimension_semantics = [#tpu.dimension_semantics<parallel>], iteration_bounds = array<i64: 1>, scalar_prefetch = 0 : i64, scratch_operands = 0 : i64, tpu.core_type = #tpu.core_type<tc>, window_params = [{transform_indices = @transform_0, window_bounds = array<i64: 8, 16>}, {pipeline_mode = #tpu.pipeline_mode<synchronous>, transform_indices = @transform_1, window_bounds = array<i64: 16, 128>}, {pipeline_mode = #tpu.pipeline_mode<synchronous>, transform_indices = @transform_2, window_bounds = array<i64: 1, 128>}, {pipeline_mode = #tpu.pipeline_mode<synchronous>, transform_indices = @transform_3, window_bounds = array<i64: 128, 128>}, {pipeline_mode = #tpu.pipeline_mode<synchronous>, transform_indices = @transform_4, window_bounds = array<i64: 1, 128>}, {transform_indices = @transform_5, window_bounds = array<i64: 8, 128>}]} {
    %c0 = arith.constant 0 : index
    %c0_0 = arith.constant 0 : index
    %0 = vector.load %arg1[%c0, %c0_0] : memref<8x16xf32, #tpu.memory_space<vmem>>, vector<8x16xf32>
    %1 = arith.truncf %0 : vector<8x16xf32> to vector<8x16xbf16>
    %c0_1 = arith.constant 0 : index
    %c0_2 = arith.constant 0 : index
    %2 = vector.load %arg2[%c0_1, %c0_2] : memref<16x128xbf16, #tpu.memory_space<vmem>>, vector<16x128xbf16>
    %cst = arith.constant dense<0.000000e+00> : vector<8x128xf32>
    %3 = tpu.matmul %1, %2, %cst {dimension_numbers = #tpu.dot_dimension_numbers<[1], [0], [0], [1], [0, 0, 1, 1], [], []>} : vector<8x16xbf16>, vector<16x128xbf16>, vector<8x128xf32> -> vector<8x128xf32>
    %c0_3 = arith.constant 0 : index
    %c0_4 = arith.constant 0 : index
    %4 = vector.load %arg3[%c0_3, %c0_4] : memref<1x128xf32, #tpu.memory_space<vmem>>, vector<1x128xf32>
    %5 = vector.broadcast %4 : vector<1x128xf32> to vector<8x128xf32>
    %6 = arith.addf %3, %5 : vector<8x128xf32>
    %cst_5 = arith.constant 0.000000e+00 : f32
    %7 = vector.broadcast %cst_5 : f32 to vector<8x128xf32>
    %8 = arith.maximumf %6, %7 : vector<8x128xf32>
    %9 = arith.truncf %8 : vector<8x128xf32> to vector<8x128xbf16>
    %c0_6 = arith.constant 0 : index
    %c0_7 = arith.constant 0 : index
    %10 = vector.load %arg4[%c0_6, %c0_7] : memref<128x128xbf16, #tpu.memory_space<vmem>>, vector<128x128xbf16>
    %cst_8 = arith.constant dense<0.000000e+00> : vector<8x128xf32>
    %11 = tpu.matmul %9, %10, %cst_8 {dimension_numbers = #tpu.dot_dimension_numbers<[1], [0], [0], [1], [0, 0, 1, 1], [], []>} : vector<8x128xbf16>, vector<128x128xbf16>, vector<8x128xf32> -> vector<8x128xf32>
    %c0_9 = arith.constant 0 : index
    %c0_10 = arith.constant 0 : index
    %12 = vector.load %arg5[%c0_9, %c0_10] : memref<1x128xf32, #tpu.memory_space<vmem>>, vector<1x128xf32>
    %13 = vector.broadcast %12 : vector<1x128xf32> to vector<8x128xf32>
    %14 = arith.addf %11, %13 : vector<8x128xf32>
    %c0_11 = arith.constant 0 : index
    %c0_12 = arith.constant 0 : index
    %15 = vector.load %arg6[%c0_11, %c0_12] : memref<8x128xf32, #tpu.memory_space<vmem>>, vector<8x128xf32>
    tpu.vector_store %arg6[%c0_11, %c0_12], %14 {strides = array<i32>} : memref<8x128xf32, #tpu.memory_space<vmem>>, vector<8x128xf32>,
    return
  }
  func.func @transform_0(%arg0: i32) -> (i32, i32) {
    %c0_i32 = arith.constant 0 : i32
    %c0_i32_0 = arith.constant 0 : i32
    return %arg0, %c0_i32 : i32, i32
  }
  func.func @transform_1(%arg0: i32) -> (i32, i32) {
    %c0_i32 = arith.constant 0 : i32
    %c0_i32_0 = arith.constant 0 : i32
    %c0_i32_1 = arith.constant 0 : i32
    return %c0_i32, %c0_i32_0 : i32, i32
  }
  func.func @transform_2(%arg0: i32) -> (i32, i32) {
    %c0_i32 = arith.constant 0 : i32
    %c0_i32_0 = arith.constant 0 : i32
    %c0_i32_1 = arith.constant 0 : i32
    return %c0_i32, %c0_i32_0 : i32, i32
  }
  func.func @transform_3(%arg0: i32) -> (i32, i32) {
    %c0_i32 = arith.constant 0 : i32
    %c0_i32_0 = arith.constant 0 : i32
    %c0_i32_1 = arith.constant 0 : i32
    return %c0_i32, %c0_i32_0 : i32, i32
  }
  func.func @transform_4(%arg0: i32) -> (i32, i32) {
    %c0_i32 = arith.constant 0 : i32
    %c0_i32_0 = arith.constant 0 : i32
    %c0_i32_1 = arith.constant 0 : i32
    return %c0_i32, %c0_i32_0 : i32, i32
  }
  func.func @transform_5(%arg0: i32) -> (i32, i32) {
    %c0_i32 = arith.constant 0 : i32
    %c0_i32_0 = arith.constant 0 : i32
    return %arg0, %c0_i32 : i32, i32
  }
}

module attributes {stable_mosaic.version = 11 : i64} {
  func.func @_mlp_fused_kernel(%arg0: i32, %arg1: memref<8x16xf32, #tpu.memory_space<vmem>>, %arg2: memref<16x128xbf16, #tpu.memory_space<vmem>>, %arg3: memref<1x128xf32, #tpu.memory_space<vmem>>, %arg4: memref<128x128xbf16, #tpu.memory_space<vmem>>, %arg5: memref<1x128xf32, #tpu.memory_space<vmem>>, %arg6: memref<8x128xf32, #tpu.memory_space<vmem>>) attributes {dimension_semantics = [#tpu.dimension_semantics<parallel>], iteration_bounds = array<i64: 1>, scalar_prefetch = 0 : i64, scratch_operands = 0 : i64, tpu.core_type = #tpu.core_type<tc>, window_params = [{transform_indices = @transform_0, window_bounds = array<i64: 8, 16>}, {pipeline_mode = #tpu.pipeline_mode<synchronous>, transform_indices = @transform_1, window_bounds = array<i64: 16, 128>}, {pipeline_mode = #tpu.pipeline_mode<synchronous>, transform_indices = @transform_2, window_bounds = array<i64: 1, 128>}, {pipeline_mode = #tpu.pipeline_mode<synchronous>, transform_indices = @transform_3, window_bounds = array<i64: 128, 128>}, {pipeline_mode = #tpu.pipeline_mode<synchronous>, transform_indices = @transform_4, window_bounds = array<i64: 1, 128>}, {transform_indices = @transform_5, window_bounds = array<i64: 8, 128>}]} {
    %c0 = arith.constant 0 : index
    %c0_0 = arith.constant 0 : index
    %0 = vector.load %arg1[%c0, %c0_0] : memref<8x16xf32, #tpu.memory_space<vmem>>, vector<8x16xf32>
    %1 = arith.truncf %0 : vector<8x16xf32> to vector<8x16xbf16>
    %c0_1 = arith.constant 0 : index
    %c0_2 = arith.constant 0 : index
    %2 = vector.load %arg2[%c0_1, %c0_2] : memref<16x128xbf16, #tpu.memory_space<vmem>>, vector<16x128xbf16>
    %cst = arith.constant dense<0.000000e+00> : vector<8x128xf32>
    %3 = tpu.matmul %1, %2, %cst {dimension_numbers = #tpu.dot_dimension_numbers<[1], [0], [0], [1], [0, 0, 1, 1], [], []>} : vector<8x16xbf16>, vector<16x128xbf16>, vector<8x128xf32> -> vector<8x128xf32>
    %c0_3 = arith.constant 0 : index
    %c0_4 = arith.constant 0 : index
    %4 = vector.load %arg3[%c0_3, %c0_4] : memref<1x128xf32, #tpu.memory_space<vmem>>, vector<1x128xf32>
    %5 = vector.broadcast %4 : vector<1x128xf32> to vector<8x128xf32>
    %6 = arith.addf %3, %5 : vector<8x128xf32>
    %cst_5 = arith.constant 0.000000e+00 : f32
    %7 = vector.broadcast %cst_5 : f32 to vector<8x128xf32>
    %8 = arith.maximumf %6, %7 : vector<8x128xf32>
    %9 = arith.truncf %8 : vector<8x128xf32> to vector<8x128xbf16>
    %c0_6 = arith.constant 0 : index
    %c0_7 = arith.constant 0 : index
    %10 = vector.load %arg4[%c0_6, %c0_7] : memref<128x128xbf16, #tpu.memory_space<vmem>>, vector<128x128xbf16>
    %cst_8 = arith.constant dense<0.000000e+00> : vector<8x128xf32>
    %11 = tpu.matmul %9, %10, %cst_8 {dimension_numbers = #tpu.dot_dimension_numbers<[1], [0], [0], [1], [0, 0, 1, 1], [], []>} : vector<8x128xbf16>, vector<128x128xbf16>, vector<8x128xf32> -> vector<8x128xf32>
    %c0_9 = arith.constant 0 : index
    %c0_10 = arith.constant 0 : index
    %12 = vector.load %arg5[%c0_9, %c0_10] : memref<1x128xf32, #tpu.memory_space<vmem>>, vector<1x128xf32>
    %13 = vector.broadcast %12 : vector<1x128xf32> to vector<8x128xf32>
    %14 = arith.addf %11, %13 : vector<8x128xf32>
    %c0_11 = arith.constant 0 : index
    %c0_12 = arith.constant 0 : index
    %15 = vector.load %arg6[%c0_11, %c0_12] : memref<8x128xf32, #tpu.memory_space<vmem>>, vector<8x128xf32>
    tpu.vector_store %arg6[%c0_11, %c0_12], %14 {strides = array<i32>} : memref<8x128xf32, #tpu.memory_space<vmem>>, vector<8x128xf32>,
    return
  }
  func.func @transform_0(%arg0: i32) -> (i32, i32) {
    %c0_i32 = arith.constant 0 : i32
    %c0_i32_0 = arith.constant 0 : i32
    return %arg0, %c0_i32 : i32, i32
  }
  func.func @transform_1(%arg0: i32) -> (i32, i32) {
    %c0_i32 = arith.constant 0 : i32
    %c0_i32_0 = arith.constant 0 : i32
    %c0_i32_1 = arith.constant 0 : i32
    return %c0_i32, %c0_i32_0 : i32, i32
  }
  func.func @transform_2(%arg0: i32) -> (i32, i32) {
    %c0_i32 = arith.constant 0 : i32
    %c0_i32_0 = arith.constant 0 : i32
    %c0_i32_1 = arith.constant 0 : i32
    return %c0_i32, %c0_i32_0 : i32, i32
  }
  func.func @transform_3(%arg0: i32) -> (i32, i32) {
    %c0_i32 = arith.constant 0 : i32
    %c0_i32_0 = arith.constant 0 : i32
    %c0_i32_1 = arith.constant 0 : i32
    return %c0_i32, %c0_i32_0 : i32, i32
  }
  func.func @transform_4(%arg0: i32) -> (i32, i32) {
    %c0_i32 = arith.constant 0 : i32
    %c0_i32_0 = arith.constant 0 : i32
    %c0_i32_1 = arith.constant 0 : i32
    return %c0_i32, %c0_i32_0 : i32, i32
  }
  func.func @transform_5(%arg0: i32) -> (i32, i32) {
    %c0_i32 = arith.constant 0 : i32
    %c0_i32_0 = arith.constant 0 : i32
    return %arg0, %c0_i32 : i32, i32
  }
}

</mosaic_0001>

<llo_original>
// kernel: tpu_custom_call.1
$region0: #{tpu_custom_call.1}
  #allocation0 [shape = 'u32[]', space=smem, size = 0x4, offset = 0x4, fixed_abs, tag = 'smem constant byte address 0x4 - core index']
  #allocation1 [shape = 'u32[144,128]{1,0:T(1,128)}', space=vmem, size = 0x12000, scoped, tag = 'internal scratch']
  %s0 = inlined_call_operand.hbm [shape: f32[8,16], index: 0, kind: input, shape index: {}]
  %s1 = inlined_call_operand.hbm [shape: bf16[16,128], index: 1, kind: input, shape index: {}]
  %s2 = inlined_call_operand.vmem [shape: f32[1,128], index: 2, kind: input, shape index: {}]
  %s3 = inlined_call_operand.hbm [shape: bf16[128,128], index: 3, kind: input, shape index: {}]
  %s4 = inlined_call_operand.vmem [shape: f32[1,128], index: 4, kind: input, shape index: {}]
  %s5 = inlined_call_operand.hbm [shape: f32[8,128], index: 5, kind: output, shape index: {}]
  %s6 = sld [smem:[#allocation0]]
  $region42: #{tpu_custom_call.1} parent=0
    _
  %s8 = ssub.s32 1, %s6
  %s9 = scalar_select 0, %s8, %s6
  $region1: #{tpu_custom_call.1} parent=0
    #allocation2 [shape = 'u8[4096]{0}', space=vmem, size = 0x1000, scoped, tag = 'input window, operand 0, single buffered']
    #allocation3 [shape = 's32[1]{0}', space=sflag, size = 0x4, scoped, tag = 'scoped memory for tpu_custom_call.1']
    #allocation4 [shape = 's32[1]{0}', space=sflag, size = 0x4, scoped, tag = 'scoped memory for tpu_custom_call.1']
    #allocation5 [shape = 'u8[4096]{0}', space=vmem, size = 0x1000, scoped, tag = 'input window, operand 1, single buffered']
    #allocation6 [shape = 's32[1]{0}', space=sflag, size = 0x4, scoped, tag = 'scoped memory for tpu_custom_call.1']
    #allocation7 [shape = 'u8[32768]{0}', space=vmem, size = 0x8000, scoped, tag = 'input window, operand 3, single buffered']
    #allocation8 [shape = 'u8[4096]{0}', space=vmem, size = 0x1000, scoped, tag = 'output window, operand 0, single buffered']
    %10 = vsyncpa [#allocation3], 0
    %11 = vsyncpa [#allocation6], 0
    %12 = vsyncpa [#allocation4], 0
    // Predicated region
    $region2: #{tpu_custom_call.1} parent=1 // pred_check
      _
    $region3: #{tpu_custom_call.1} parent=1 // pred_check_branch
      %14 = sbr.rel (0) target = $region5
    $region4: #{tpu_custom_call.1} parent=1 // pred_region
      %s16 = ssub.s32 128, 128
      %17 = vsyncadd [#allocation3], %s16
      %s19 = sshll.u32 [#allocation2], 4
      %s20 = int_to_ptr.vmem [resolvable:$true] %s19
      %22 = dma.hbm_to_vmem [thread:$0]  %s0, 128, %s20, [#allocation3]
    $region5: #{tpu_custom_call.1} parent=1 // pred_fallthru
      _
    // Predicated region
    $region6: #{tpu_custom_call.1} parent=1 // pred_check
      _
    $region7: #{tpu_custom_call.1} parent=1 // pred_check_branch
      %24 = sbr.rel (0) target = $region9
    $region8: #{tpu_custom_call.1} parent=1 // pred_region
      %s26 = ssub.s32 128, 128
      %27 = vsyncadd [#allocation6], %s26
      %s28 = sshll.u32 [#allocation5], 4
      %s29 = int_to_ptr.vmem [resolvable:$true] %s28
      %34 = dma.hbm_to_vmem [thread:$0]  %s1, 128, %s29, [#allocation6], 64, 64, 4
    $region9: #{tpu_custom_call.1} parent=1 // pred_fallthru
      _
    // Predicated region
    $region10: #{tpu_custom_call.1} parent=1 // pred_check
      _
    $region11: #{tpu_custom_call.1} parent=1 // pred_check_branch
      %36 = sbr.rel (0) target = $region13
    $region12: #{tpu_custom_call.1} parent=1 // pred_region
      _
    $region13: #{tpu_custom_call.1} parent=1 // pred_fallthru
      _
    // Predicated region
    $region14: #{tpu_custom_call.1} parent=1 // pred_check
      _
    $region15: #{tpu_custom_call.1} parent=1 // pred_check_branch
      %38 = sbr.rel (0) target = $region17
    $region16: #{tpu_custom_call.1} parent=1 // pred_region
      %s40 = ssub.s32 1024, 1024
      %41 = vsyncadd [#allocation6], %s40
      %s42 = sshll.u32 [#allocation7], 4
      %s43 = int_to_ptr.vmem [resolvable:$true] %s42
      %48 = dma.hbm_to_vmem [thread:$0]  %s3, 1024, %s43, [#allocation6], 64, 64, 4
    $region17: #{tpu_custom_call.1} parent=1 // pred_fallthru
      _
    // Predicated region
    $region18: #{tpu_custom_call.1} parent=1 // pred_check
      _
    $region19: #{tpu_custom_call.1} parent=1 // pred_check_branch
      %50 = sbr.rel (0) target = $region21
    $region20: #{tpu_custom_call.1} parent=1 // pred_region
      _
    $region21: #{tpu_custom_call.1} parent=1 // pred_fallthru
      _
    // Predicated region
    $region22: #{tpu_custom_call.1} parent=1 // pred_check
      _
    $region23: #{tpu_custom_call.1} parent=1 // pred_check_branch
      %52 = sbr.rel (0) target = $region25
    $region24: #{tpu_custom_call.1} parent=1 // pred_region
      %53 = dma.done [#allocation3], 128
    $region25: #{tpu_custom_call.1} parent=1 // pred_fallthru
      _
    // Predicated region
    $region26: #{tpu_custom_call.1} parent=1 // pred_check
      _
    $region27: #{tpu_custom_call.1} parent=1 // pred_check_branch
      %55 = sbr.rel (0) target = $region29
    $region28: #{tpu_custom_call.1} parent=1 // pred_region
      %56 = dma.done [#allocation6], 128
    $region29: #{tpu_custom_call.1} parent=1 // pred_fallthru
      _
    // Predicated region
    $region30: #{tpu_custom_call.1} parent=1 // pred_check
      _
    $region31: #{tpu_custom_call.1} parent=1 // pred_check_branch
      %58 = sbr.rel (0) target = $region33
    $region32: #{tpu_custom_call.1} parent=1 // pred_region
      %59 = dma.done [#allocation6], 1024
    $region33: #{tpu_custom_call.1} parent=1 // pred_fallthru
      _
    %v61 = vld [vmem:[#allocation2] sm:$0xff]
    %v62 = vpack.c.bf16 %v61, %v61
    %v63 = vld [vmem:[#allocation5] sm:$0xf]
    %v64 = vld [vmem:[#allocation5 + $0x4] sm:$0xf]
    %v65 = vld [vmem:[%s2] sm:$0x1]
    %v67 = vlaneseq
    %v68 = vshrl.u32 %v67, 7
    %v69 = vsub.s32 0, %v68
    %v70 = vrot.slane %v65, %v69
    %v74 = vunpack.c.l.b16 %v63
    %v75 = vunpack.c.l.b16 %v64
    %v76 = vpack.c.b16 %v75, %v74
    %vm78 = vcmask 130048
    %v80 = vsel %vm78, %v62, 0
    %82 = vmatprep.subr.bf16.mxu0 0
    %83 = vmatpush1.bf16.msra.mxu0 0
    %84 = vmatprep.subr.bf16.mxu0 0
    %85 = vmatpush1.bf16.msra.mxu0 0
    %86 = vmatprep.subr.bf16.mxu0 0
    %87 = vmatpush1.bf16.msra.mxu0 0
    %88 = vmatprep.subr.bf16.mxu0 0
    %89 = vmatpush1.bf16.msra.mxu0 0
    %90 = vmatprep.subr.bf16.mxu0 0
    %91 = vmatpush1.bf16.msra.mxu0 0
    %92 = vmatprep.subr.bf16.mxu0 0
    %93 = vmatpush1.bf16.msra.mxu0 0
    %94 = vmatprep.subr.bf16.mxu0 0
    %95 = vmatpush1.bf16.msra.mxu0 0
    %96 = vmatprep.subr.bf16.mxu0 0
    %97 = vmatpush1.bf16.msra.mxu0 %v76
    %98 = vmatprep.subr.bf16.mxu0 0
    %99 = vmatpush2.bf16.msra.mxu0 0
    %100 = vmatprep.subr.bf16.mxu0 0
    %101 = vmatpush2.bf16.msra.mxu0 0
    %102 = vmatprep.subr.bf16.mxu0 0
    %103 = vmatpush2.bf16.msra.mxu0 0
    %104 = vmatprep.subr.bf16.mxu0 0
    %105 = vmatpush2.bf16.msra.mxu0 0
    %106 = vmatprep.subr.bf16.mxu0 0
    %107 = vmatpush2.bf16.msra.mxu0 0
    %108 = vmatprep.subr.bf16.mxu0 0
    %109 = vmatpush2.bf16.msra.mxu0 0
    %110 = vmatprep.subr.bf16.mxu0 0
    %111 = vmatpush2.bf16.msra.mxu0 0
    %112 = vmatprep.subr.bf16.mxu0 0
    %113 = vmatpush2.bf16.msra.mxu0 0
    %114 = vmatprep.mubr.bf16.mxu0 0
    %115 = vmatmul.mubr.bf16.gmra.mxu0 %v80
    %v116 = vpop.f32.mrf.mxu0
    %v117 = vadd.f32 %v70, %v116
    %v118 = vpop.f32.mrf.mxu0
    %v119 = vpop.f32.mrf.mxu0
    %v120 = vpop.f32.mrf.mxu0
    %121 = vdwg.mxu0
    %v122 = vmax.f32 %v117, 0.0
    %v123 = vpack.c.bf16 %v122, %v122
    %v124 = vld [vmem:[#allocation7] sm:$0xf]
    %v125 = vld [vmem:[#allocation7 + $0x4] sm:$0xf]
    %v126 = vld [vmem:[#allocation7 + $0x8] sm:$0xf]
    %v127 = vld [vmem:[#allocation7 + $0xc] sm:$0xf]
    %v128 = vld [vmem:[#allocation7 + $0x10] sm:$0xf]
    %v129 = vld [vmem:[#allocation7 + $0x14] sm:$0xf]
    %v130 = vld [vmem:[#allocation7 + $0x18] sm:$0xf]
    %v131 = vld [vmem:[#allocation7 + $0x1c] sm:$0xf]
    %v132 = vld [vmem:[#allocation7 + $0x20] sm:$0xf]
    %v133 = vld [vmem:[#allocation7 + $0x24] sm:$0xf]
    %v134 = vld [vmem:[#allocation7 + $0x28] sm:$0xf]
    %v135 = vld [vmem:[#allocation7 + $0x2c] sm:$0xf]
    %v136 = vld [vmem:[#allocation7 + $0x30] sm:$0xf]
    %v137 = vld [vmem:[#allocation7 + $0x34] sm:$0xf]
    %v138 = vld [vmem:[#allocation7 + $0x38] sm:$0xf]
    %v139 = vld [vmem:[#allocation7 + $0x3c] sm:$0xf]
    %v140 = vld [vmem:[%s4] sm:$0x1]
    %v142 = vlaneseq
    %v143 = vshrl.u32 %v142, 7
    %v144 = vsub.s32 0, %v143
    %v145 = vrot.slane %v140, %v144
    %v163 = vunpack.c.l.b16 %v124
    %v164 = vunpack.c.l.b16 %v125
    %v165 = vunpack.c.l.b16 %v126
    %v166 = vunpack.c.l.b16 %v127
    %v167 = vunpack.c.l.b16 %v128
    %v168 = vunpack.c.l.b16 %v129
    %v169 = vunpack.c.l.b16 %v130
    %v170 = vunpack.c.l.b16 %v131
    %v171 = vunpack.c.l.b16 %v132
    %v172 = vunpack.c.l.b16 %v133
    %v173 = vunpack.c.l.b16 %v134
    %v174 = vunpack.c.l.b16 %v135
    %v175 = vunpack.c.l.b16 %v136
    %v176 = vunpack.c.l.b16 %v137
    %v177 = vunpack.c.l.b16 %v138
    %v178 = vunpack.c.l.b16 %v139
    %v179 = vpack.c.b16 %v164, %v163
    %v180 = vpack.c.b16 %v166, %v165
    %v181 = vpack.c.b16 %v168, %v167
    %v182 = vpack.c.b16 %v170, %v169
    %v183 = vpack.c.b16 %v172, %v171
    %v184 = vpack.c.b16 %v174, %v173
    %v185 = vpack.c.b16 %v176, %v175
    %v186 = vpack.c.b16 %v178, %v177
    %195 = vmatprep.subr.bf16.mxu0 0
    %196 = vmatpush1.bf16.msra.mxu0 %v186
    %197 = vmatprep.subr.bf16.mxu0 0
    %198 = vmatpush1.bf16.msra.mxu0 %v185
    %199 = vmatprep.subr.bf16.mxu0 0
    %200 = vmatpush1.bf16.msra.mxu0 %v184
    %201 = vmatprep.subr.bf16.mxu0 0
    %202 = vmatpush1.bf16.msra.mxu0 %v183
    %203 = vmatprep.subr.bf16.mxu0 0
    %204 = vmatpush1.bf16.msra.mxu0 %v182
    %205 = vmatprep.subr.bf16.mxu0 0
    %206 = vmatpush1.bf16.msra.mxu0 %v181
    %207 = vmatprep.subr.bf16.mxu0 0
    %208 = vmatpush1.bf16.msra.mxu0 %v180
    %209 = vmatprep.subr.bf16.mxu0 0
    %210 = vmatpush1.bf16.msra.mxu0 %v179
    %211 = vmatprep.subr.bf16.mxu0 0
    %212 = vmatpush2.bf16.msra.mxu0 0
    %213 = vmatprep.subr.bf16.mxu0 0
    %214 = vmatpush2.bf16.msra.mxu0 0
    %215 = vmatprep.subr.bf16.mxu0 0
    %216 = vmatpush2.bf16.msra.mxu0 0
    %217 = vmatprep.subr.bf16.mxu0 0
    %218 = vmatpush2.bf16.msra.mxu0 0
    %219 = vmatprep.subr.bf16.mxu0 0
    %220 = vmatpush2.bf16.msra.mxu0 0
    %221 = vmatprep.subr.bf16.mxu0 0
    %222 = vmatpush2.bf16.msra.mxu0 0
    %223 = vmatprep.subr.bf16.mxu0 0
    %224 = vmatpush2.bf16.msra.mxu0 0
    %225 = vmatprep.subr.bf16.mxu0 0
    %226 = vmatpush2.bf16.msra.mxu0 0
    %227 = vmatprep.mubr.bf16.mxu0 0
    %228 = vmatmul.mubr.bf16.gmra.mxu0 %v123
    %v229 = vpop.f32.mrf.mxu0
    %v230 = vadd.f32 %v145, %v229
    %v231 = vpop.f32.mrf.mxu0
    %v232 = vpop.f32.mrf.mxu0
    %v233 = vpop.f32.mrf.mxu0
    %234 = vdwg.mxu0
    %235 = vst [vmem:[#allocation8] sm:$0xff] %v230
    // Predicated region
    $region34: #{tpu_custom_call.1} parent=1 // pred_check
      _
    $region35: #{tpu_custom_call.1} parent=1 // pred_check_branch
      %237 = sbr.rel (0) target = $region37
    $region36: #{tpu_custom_call.1} parent=1 // pred_region
      %s239 = ssub.s32 128, 128
      %240 = vsyncadd [#allocation4], %s239
      %s242 = sshll.u32 [#allocation8], 4
      %s243 = int_to_ptr.vmem [resolvable:$true] %s242
      %245 = dma.vmem_to_hbm [thread:$0]  %s243, 128, %s5, [#allocation4]
    $region37: #{tpu_custom_call.1} parent=1 // pred_fallthru
      _
    // Predicated region
    $region38: #{tpu_custom_call.1} parent=1 // pred_check
      _
    $region39: #{tpu_custom_call.1} parent=1 // pred_check_branch
      %247 = sbr.rel (0) target = $region41
    $region40: #{tpu_custom_call.1} parent=1 // pred_region
      %248 = dma.done [#allocation4], 128
    $region41: #{tpu_custom_call.1} parent=1 // pred_fallthru
      _
    %249 = vsyncpa [#allocation3], 1
    %250 = vsyncpa [#allocation6], 1
    %251 = vsyncpa [#allocation4], 1

// kernel: tpu_custom_call.1
$region0: #{tpu_custom_call.1}
  #allocation0 [shape = 'u32[]', space=smem, size = 0x4, offset = 0x4, fixed_abs, tag = 'smem constant byte address 0x4 - core index']
  #allocation1 [shape = 'u32[144,128]{1,0:T(1,128)}', space=vmem, size = 0x12000, scoped, tag = 'internal scratch']
  %s0 = inlined_call_operand.hbm [shape: f32[8,16], index: 0, kind: input, shape index: {}]
  %s1 = inlined_call_operand.hbm [shape: bf16[16,128], index: 1, kind: input, shape index: {}]
  %s2 = inlined_call_operand.vmem [shape: f32[1,128], index: 2, kind: input, shape index: {}]
  %s3 = inlined_call_operand.hbm [shape: bf16[128,128], index: 3, kind: input, shape index: {}]
  %s4 = inlined_call_operand.vmem [shape: f32[1,128], index: 4, kind: input, shape index: {}]
  %s5 = inlined_call_operand.hbm [shape: f32[8,128], index: 5, kind: output, shape index: {}]
  %s6 = sld [smem:[#allocation0]]
  $region42: #{tpu_custom_call.1} parent=0
    _
  %s8 = ssub.s32 1, %s6
  %s9 = scalar_select 0, %s8, %s6
  $region1: #{tpu_custom_call.1} parent=0
    #allocation2 [shape = 'u8[4096]{0}', space=vmem, size = 0x1000, scoped, tag = 'input window, operand 0, single buffered']
    #allocation3 [shape = 's32[1]{0}', space=sflag, size = 0x4, scoped, tag = 'scoped memory for tpu_custom_call.1']
    #allocation4 [shape = 's32[1]{0}', space=sflag, size = 0x4, scoped, tag = 'scoped memory for tpu_custom_call.1']
    #allocation5 [shape = 'u8[4096]{0}', space=vmem, size = 0x1000, scoped, tag = 'input window, operand 1, single buffered']
    #allocation6 [shape = 's32[1]{0}', space=sflag, size = 0x4, scoped, tag = 'scoped memory for tpu_custom_call.1']
    #allocation7 [shape = 'u8[32768]{0}', space=vmem, size = 0x8000, scoped, tag = 'input window, operand 3, single buffered']
    #allocation8 [shape = 'u8[4096]{0}', space=vmem, size = 0x1000, scoped, tag = 'output window, operand 0, single buffered']
    %10 = vsyncpa [#allocation3], 0
    %11 = vsyncpa [#allocation6], 0
    %12 = vsyncpa [#allocation4], 0
    // Predicated region
    $region2: #{tpu_custom_call.1} parent=1 // pred_check
      _
    $region3: #{tpu_custom_call.1} parent=1 // pred_check_branch
      %14 = sbr.rel (0) target = $region5
    $region4: #{tpu_custom_call.1} parent=1 // pred_region
      %s16 = ssub.s32 128, 128
      %17 = vsyncadd [#allocation3], %s16
      %s19 = sshll.u32 [#allocation2], 4
      %s20 = int_to_ptr.vmem [resolvable:$true] %s19
      %22 = dma.hbm_to_vmem [thread:$0]  %s0, 128, %s20, [#allocation3]
    $region5: #{tpu_custom_call.1} parent=1 // pred_fallthru
      _
    // Predicated region
    $region6: #{tpu_custom_call.1} parent=1 // pred_check
      _
    $region7: #{tpu_custom_call.1} parent=1 // pred_check_branch
      %24 = sbr.rel (0) target = $region9
    $region8: #{tpu_custom_call.1} parent=1 // pred_region
      %s26 = ssub.s32 128, 128
      %27 = vsyncadd [#allocation6], %s26
      %s28 = sshll.u32 [#allocation5], 4
      %s29 = int_to_ptr.vmem [resolvable:$true] %s28
      %34 = dma.hbm_to_vmem [thread:$0]  %s1, 128, %s29, [#allocation6], 64, 64, 4
    $region9: #{tpu_custom_call.1} parent=1 // pred_fallthru
      _
    // Predicated region
    $region10: #{tpu_custom_call.1} parent=1 // pred_check
      _
    $region11: #{tpu_custom_call.1} parent=1 // pred_check_branch
      %36 = sbr.rel (0) target = $region13
    $region12: #{tpu_custom_call.1} parent=1 // pred_region
      _
    $region13: #{tpu_custom_call.1} parent=1 // pred_fallthru
      _
    // Predicated region
    $region14: #{tpu_custom_call.1} parent=1 // pred_check
      _
    $region15: #{tpu_custom_call.1} parent=1 // pred_check_branch
      %38 = sbr.rel (0) target = $region17
    $region16: #{tpu_custom_call.1} parent=1 // pred_region
      %s40 = ssub.s32 1024, 1024
      %41 = vsyncadd [#allocation6], %s40
      %s42 = sshll.u32 [#allocation7], 4
      %s43 = int_to_ptr.vmem [resolvable:$true] %s42
      %48 = dma.hbm_to_vmem [thread:$0]  %s3, 1024, %s43, [#allocation6], 64, 64, 4
    $region17: #{tpu_custom_call.1} parent=1 // pred_fallthru
      _
    // Predicated region
    $region18: #{tpu_custom_call.1} parent=1 // pred_check
      _
    $region19: #{tpu_custom_call.1} parent=1 // pred_check_branch
      %50 = sbr.rel (0) target = $region21
    $region20: #{tpu_custom_call.1} parent=1 // pred_region
      _
    $region21: #{tpu_custom_call.1} parent=1 // pred_fallthru
      _
    // Predicated region
    $region22: #{tpu_custom_call.1} parent=1 // pred_check
      _
    $region23: #{tpu_custom_call.1} parent=1 // pred_check_branch
      %52 = sbr.rel (0) target = $region25
    $region24: #{tpu_custom_call.1} parent=1 // pred_region
      %53 = dma.done [#allocation3], 128
    $region25: #{tpu_custom_call.1} parent=1 // pred_fallthru
      _
    // Predicated region
    $region26: #{tpu_custom_call.1} parent=1 // pred_check
      _
    $region27: #{tpu_custom_call.1} parent=1 // pred_check_branch
      %55 = sbr.rel (0) target = $region29
    $region28: #{tpu_custom_call.1} parent=1 // pred_region
      %56 = dma.done [#allocation6], 128
    $region29: #{tpu_custom_call.1} parent=1 // pred_fallthru
      _
    // Predicated region
    $region30: #{tpu_custom_call.1} parent=1 // pred_check
      _
    $region31: #{tpu_custom_call.1} parent=1 // pred_check_branch
      %58 = sbr.rel (0) target = $region33
    $region32: #{tpu_custom_call.1} parent=1 // pred_region
      %59 = dma.done [#allocation6], 1024
    $region33: #{tpu_custom_call.1} parent=1 // pred_fallthru
      _
    %v61 = vld [vmem:[#allocation2] sm:$0xff]
    %v62 = vpack.c.bf16 %v61, %v61
    %v63 = vld [vmem:[#allocation5] sm:$0xf]
    %v64 = vld [vmem:[#allocation5 + $0x4] sm:$0xf]
    %v65 = vld [vmem:[%s2] sm:$0x1]
    %v67 = vlaneseq
    %v68 = vshrl.u32 %v67, 7
    %v69 = vsub.s32 0, %v68
    %v70 = vrot.slane %v65, %v69
    %v74 = vunpack.c.l.b16 %v63
    %v75 = vunpack.c.l.b16 %v64
    %v76 = vpack.c.b16 %v75, %v74
    %vm78 = vcmask 130048
    %v80 = vsel %vm78, %v62, 0
    %82 = vmatprep.subr.bf16.mxu0 0
    %83 = vmatpush1.bf16.msra.mxu0 0
    %84 = vmatprep.subr.bf16.mxu0 0
    %85 = vmatpush1.bf16.msra.mxu0 0
    %86 = vmatprep.subr.bf16.mxu0 0
    %87 = vmatpush1.bf16.msra.mxu0 0
    %88 = vmatprep.subr.bf16.mxu0 0
    %89 = vmatpush1.bf16.msra.mxu0 0
    %90 = vmatprep.subr.bf16.mxu0 0
    %91 = vmatpush1.bf16.msra.mxu0 0
    %92 = vmatprep.subr.bf16.mxu0 0
    %93 = vmatpush1.bf16.msra.mxu0 0
    %94 = vmatprep.subr.bf16.mxu0 0
    %95 = vmatpush1.bf16.msra.mxu0 0
    %96 = vmatprep.subr.bf16.mxu0 0
    %97 = vmatpush1.bf16.msra.mxu0 %v76
    %98 = vmatprep.subr.bf16.mxu0 0
    %99 = vmatpush2.bf16.msra.mxu0 0
    %100 = vmatprep.subr.bf16.mxu0 0
    %101 = vmatpush2.bf16.msra.mxu0 0
    %102 = vmatprep.subr.bf16.mxu0 0
    %103 = vmatpush2.bf16.msra.mxu0 0
    %104 = vmatprep.subr.bf16.mxu0 0
    %105 = vmatpush2.bf16.msra.mxu0 0
    %106 = vmatprep.subr.bf16.mxu0 0
    %107 = vmatpush2.bf16.msra.mxu0 0
    %108 = vmatprep.subr.bf16.mxu0 0
    %109 = vmatpush2.bf16.msra.mxu0 0
    %110 = vmatprep.subr.bf16.mxu0 0
    %111 = vmatpush2.bf16.msra.mxu0 0
    %112 = vmatprep.subr.bf16.mxu0 0
    %113 = vmatpush2.bf16.msra.mxu0 0
    %114 = vmatprep.mubr.bf16.mxu0 0
    %115 = vmatmul.mubr.bf16.gmra.mxu0 %v80
    %v116 = vpop.f32.mrf.mxu0
    %v117 = vadd.f32 %v70, %v116
    %v118 = vpop.f32.mrf.mxu0
    %v119 = vpop.f32.mrf.mxu0
    %v120 = vpop.f32.mrf.mxu0
    %121 = vdwg.mxu0
    %v122 = vmax.f32 %v117, 0.0
    %v123 = vpack.c.bf16 %v122, %v122
    %v124 = vld [vmem:[#allocation7] sm:$0xf]
    %v125 = vld [vmem:[#allocation7 + $0x4] sm:$0xf]
    %v126 = vld [vmem:[#allocation7 + $0x8] sm:$0xf]
    %v127 = vld [vmem:[#allocation7 + $0xc] sm:$0xf]
    %v128 = vld [vmem:[#allocation7 + $0x10] sm:$0xf]
    %v129 = vld [vmem:[#allocation7 + $0x14] sm:$0xf]
    %v130 = vld [vmem:[#allocation7 + $0x18] sm:$0xf]
    %v131 = vld [vmem:[#allocation7 + $0x1c] sm:$0xf]
    %v132 = vld [vmem:[#allocation7 + $0x20] sm:$0xf]
    %v133 = vld [vmem:[#allocation7 + $0x24] sm:$0xf]
    %v134 = vld [vmem:[#allocation7 + $0x28] sm:$0xf]
    %v135 = vld [vmem:[#allocation7 + $0x2c] sm:$0xf]
    %v136 = vld [vmem:[#allocation7 + $0x30] sm:$0xf]
    %v137 = vld [vmem:[#allocation7 + $0x34] sm:$0xf]
    %v138 = vld [vmem:[#allocation7 + $0x38] sm:$0xf]
    %v139 = vld [vmem:[#allocation7 + $0x3c] sm:$0xf]
    %v140 = vld [vmem:[%s4] sm:$0x1]
    %v142 = vlaneseq
    %v143 = vshrl.u32 %v142, 7
    %v144 = vsub.s32 0, %v143
    %v145 = vrot.slane %v140, %v144
    %v163 = vunpack.c.l.b16 %v124
    %v164 = vunpack.c.l.b16 %v125
    %v165 = vunpack.c.l.b16 %v126
    %v166 = vunpack.c.l.b16 %v127
    %v167 = vunpack.c.l.b16 %v128
    %v168 = vunpack.c.l.b16 %v129
    %v169 = vunpack.c.l.b16 %v130
    %v170 = vunpack.c.l.b16 %v131
    %v171 = vunpack.c.l.b16 %v132
    %v172 = vunpack.c.l.b16 %v133
    %v173 = vunpack.c.l.b16 %v134
    %v174 = vunpack.c.l.b16 %v135
    %v175 = vunpack.c.l.b16 %v136
    %v176 = vunpack.c.l.b16 %v137
    %v177 = vunpack.c.l.b16 %v138
    %v178 = vunpack.c.l.b16 %v139
    %v179 = vpack.c.b16 %v164, %v163
    %v180 = vpack.c.b16 %v166, %v165
    %v181 = vpack.c.b16 %v168, %v167
    %v182 = vpack.c.b16 %v170, %v169
    %v183 = vpack.c.b16 %v172, %v171
    %v184 = vpack.c.b16 %v174, %v173
    %v185 = vpack.c.b16 %v176, %v175
    %v186 = vpack.c.b16 %v178, %v177
    %195 = vmatprep.subr.bf16.mxu0 0
    %196 = vmatpush1.bf16.msra.mxu0 %v186
    %197 = vmatprep.subr.bf16.mxu0 0
    %198 = vmatpush1.bf16.msra.mxu0 %v185
    %199 = vmatprep.subr.bf16.mxu0 0
    %200 = vmatpush1.bf16.msra.mxu0 %v184
    %201 = vmatprep.subr.bf16.mxu0 0
    %202 = vmatpush1.bf16.msra.mxu0 %v183
    %203 = vmatprep.subr.bf16.mxu0 0
    %204 = vmatpush1.bf16.msra.mxu0 %v182
    %205 = vmatprep.subr.bf16.mxu0 0
    %206 = vmatpush1.bf16.msra.mxu0 %v181
    %207 = vmatprep.subr.bf16.mxu0 0
    %208 = vmatpush1.bf16.msra.mxu0 %v180
    %209 = vmatprep.subr.bf16.mxu0 0
    %210 = vmatpush1.bf16.msra.mxu0 %v179
    %211 = vmatprep.subr.bf16.mxu0 0
    %212 = vmatpush2.bf16.msra.mxu0 0
    %213 = vmatprep.subr.bf16.mxu0 0
    %214 = vmatpush2.bf16.msra.mxu0 0
    %215 = vmatprep.subr.bf16.mxu0 0
    %216 = vmatpush2.bf16.msra.mxu0 0
    %217 = vmatprep.subr.bf16.mxu0 0
    %218 = vmatpush2.bf16.msra.mxu0 0
    %219 = vmatprep.subr.bf16.mxu0 0
    %220 = vmatpush2.bf16.msra.mxu0 0
    %221 = vmatprep.subr.bf16.mxu0 0
    %222 = vmatpush2.bf16.msra.mxu0 0
    %223 = vmatprep.subr.bf16.mxu0 0
    %224 = vmatpush2.bf16.msra.mxu0 0
    %225 = vmatprep.subr.bf16.mxu0 0
    %226 = vmatpush2.bf16.msra.mxu0 0
    %227 = vmatprep.mubr.bf16.mxu0 0
    %228 = vmatmul.mubr.bf16.gmra.mxu0 %v123
    %v229 = vpop.f32.mrf.mxu0
    %v230 = vadd.f32 %v145, %v229
    %v231 = vpop.f32.mrf.mxu0
    %v232 = vpop.f32.mrf.mxu0
    %v233 = vpop.f32.mrf.mxu0
    %234 = vdwg.mxu0
    %235 = vst [vmem:[#allocation8] sm:$0xff] %v230
    // Predicated region
    $region34: #{tpu_custom_call.1} parent=1 // pred_check
      _
    $region35: #{tpu_custom_call.1} parent=1 // pred_check_branch
      %237 = sbr.rel (0) target = $region37
    $region36: #{tpu_custom_call.1} parent=1 // pred_region
      %s239 = ssub.s32 128, 128
      %240 = vsyncadd [#allocation4], %s239
      %s242 = sshll.u32 [#allocation8], 4
      %s243 = int_to_ptr.vmem [resolvable:$true] %s242
      %245 = dma.vmem_to_hbm [thread:$0]  %s243, 128, %s5, [#allocation4]
    $region37: #{tpu_custom_call.1} parent=1 // pred_fallthru
      _
    // Predicated region
    $region38: #{tpu_custom_call.1} parent=1 // pred_check
      _
    $region39: #{tpu_custom_call.1} parent=1 // pred_check_branch
      %247 = sbr.rel (0) target = $region41
    $region40: #{tpu_custom_call.1} parent=1 // pred_region
      %248 = dma.done [#allocation4], 128
    $region41: #{tpu_custom_call.1} parent=1 // pred_fallthru
      _
    %249 = vsyncpa [#allocation3], 1
    %250 = vsyncpa [#allocation6], 1
    %251 = vsyncpa [#allocation4], 1

</llo_original>
